<compile_context>
chip_gen: v7x
topology: tpu7x:2x2x1
jax: 0.10.0
libtpu: 0.0.40
codegen_flags: <defaults>
</compile_context>

<pallas_src>
import functools
import math

import jax
import jax.numpy as jnp
from jax import lax
from jax.experimental import pallas as pl
from jax.experimental.pallas import tpu as pltpu


_VMEM_LIMIT_BYTES = 48 * 1024 * 1024  # safe on v5e/v6e (128 MiB) and v7x (64 MiB per TC)


def _round_up(n, m):
    return ((n + m - 1) // m) * m


# --------------------------------------------------------------------------- #
# Kernel 1: fused Q/K/V 1x1-conv projection (once per token tile, bf16 outputs)
# --------------------------------------------------------------------------- #
def _qkv_proj_kernel(x_ref, wq_ref, bq_ref, wk_ref, bk_ref, wv_ref, bv_ref,
                     q_ref, k_ref, v_ref):
    # x_ref : (1, TP, C) f32      wq/wk : (C, C8) bf16      wv : (C, C) bf16
    # bq/bk : (1, C8) f32         bv    : (1, C) f32
    # outs  : q/k (1, TP, C8) bf16, v (1, TP, C) bf16
    x = x_ref[0].astype(jnp.bfloat16)          # single cast, fused with the projection
    q = jnp.dot(x, wq_ref[...], preferred_element_type=jnp.float32) + bq_ref[...]
    k = jnp.dot(x, wk_ref[...], preferred_element_type=jnp.float32) + bk_ref[...]
    v = jnp.dot(x, wv_ref[...], preferred_element_type=jnp.float32) + bv_ref[...]
    q_ref[0] = q.astype(jnp.bfloat16)
    k_ref[0] = k.astype(jnp.bfloat16)
    v_ref[0] = v.astype(jnp.bfloat16)


# --------------------------------------------------------------------------- #
# Kernel 2: flash attention over precomputed bf16 Q/K/V + gamma * out + x
# --------------------------------------------------------------------------- #
def _flash_attn_kernel(x_ref, q_ref, k_ref, v_ref, gamma_ref, o_ref,
                       m_sc, l_sc, acc_sc, *, n_valid, block_k):
    # x_ref : (1, TQ, C)  f32   residual tile (block index constant over the kv axis)
    # q_ref : (1, TQ, C8) bf16,  k_ref : (1, TK, C8) bf16,  v_ref : (1, TK, C) bf16
    # gamma_ref : (1, 1) f32 scalar in SMEM
    # o_ref : (1, TQ, C) f32 — written once on the last kv step
    # scratch: m_sc/l_sc (TQ, 1) f32, acc_sc (TQ, C) f32
    ki = pl.program_id(2)
    nk = pl.num_programs(2)

    @pl.when(ki == 0)
    def _init():
        m_sc[...] = jnp.full(m_sc.shape, -jnp.inf, dtype=m_sc.dtype)
        l_sc[...] = jnp.zeros_like(l_sc)
        acc_sc[...] = jnp.zeros_like(acc_sc)

    q = q_ref[0]                                   # (TQ, C8) bf16
    k = k_ref[0]                                   # (TK, C8) bf16
    v = v_ref[0]                                   # (TK, C)  bf16

    # energy[i, j] = <q_i, k_j>: bf16 MXU operands, f32 accumulation, no k.T temporary.
    s = lax.dot_general(q, k, dimension_numbers=(((1,), (1,)), ((), ())),
                        preferred_element_type=jnp.float32)          # (TQ, TK) f32

    if n_valid is not None:
        # N was padded up to a tile multiple in the wrapper; mask the padded kv columns.
        col = lax.broadcasted_iota(jnp.int32, s.shape, 1) + ki * block_k
        s = jnp.where(col < n_valid, s, -jnp.inf)

    # Online softmax in f32 (VPU/EUP, v5e-safe); normalization deferred to finalize.
    m_prev = m_sc[...]
    m_new = jnp.maximum(m_prev, jnp.max(s, axis=-1, keepdims=True))  # (TQ, 1)
    alpha = jnp.exp(m_prev - m_new)
    p = jnp.exp(s - m_new)                                           # (TQ, TK)
    l_sc[...] = alpha * l_sc[...] + jnp.sum(p, axis=-1, keepdims=True)
    acc_sc[...] = alpha * acc_sc[...] + jnp.dot(
        p.astype(jnp.bfloat16), v, preferred_element_type=jnp.float32)
    m_sc[...] = m_new

    @pl.when(ki == nk - 1)
    def _finalize():
        inv_l = pl.reciprocal(l_sc[...], approx=False)   # exact; once per q-tile
        gamma = gamma_ref[0, 0]
        o_ref[0] = (gamma * (acc_sc[...] * inv_l) + x_ref[0]).astype(o_ref.dtype)


def self_attention_block(x_nchw, params, *, block_q=None, block_k=None):
    """x_nchw: (B, C, H, W) float32. params: dict of weights. Returns (B, C, H, W).

    Same forward semantics as the PyTorch SelfAttentionBlock.
    """
    B, C, H, W = x_nchw.shape
    N = H * W
    C8 = params["wq"].shape[1]

    # ---- tile selection: always a multiple of 128, never a full-N fallback ----
    if block_q is None:
        block_q = min(512, _round_up(min(N, 512), 128))
        # v7x megacore: make sure both TensorCores get at least one q tile.
        while block_q > 128 and B * ((N + block_q - 1) // block_q) < 2:
            block_q = max(128, block_q // 2)
    if block_k is None:
        block_k = min(512, _round_up(min(N, 512), 128))
    n_pad = _round_up(N, math.lcm(block_q, block_k))

    # ---- wrapper-side layout & precision prep ----
    x_bnc = jnp.transpose(x_nchw.reshape(B, C, N), (0, 2, 1)).astype(jnp.float32)
    if n_pad != N:
        x_bnc = jnp.pad(x_bnc, ((0, 0), (0, n_pad - N), (0, 0)))

    wq = params["wq"].astype(jnp.bfloat16)
    wk = params["wk"].astype(jnp.bfloat16)
    wv = params["wv"].astype(jnp.bfloat16)
    bq = params["bq"].reshape(1, C8).astype(jnp.float32)
    bk = params["bk"].reshape(1, C8).astype(jnp.float32)
    bv = params["bv"].reshape(1, C).astype(jnp.float32)
    gamma = params["gamma"].reshape(1, 1).astype(jnp.float32)

    # ---- stage 1: project Q/K/V once per token (bf16 outputs) ----
    tp = block_k  # divides n_pad by construction
    proj = pl.pallas_call(
        _qkv_proj_kernel,
        out_shape=(jax.ShapeDtypeStruct((B, n_pad, C8), jnp.bfloat16),
                   jax.ShapeDtypeStruct((B, n_pad, C8), jnp.bfloat16),
                   jax.ShapeDtypeStruct((B, n_pad, C), jnp.bfloat16)),
        grid_spec=pltpu.PrefetchScalarGridSpec(
            num_scalar_prefetch=0,
            grid=(B, n_pad // tp),
            in_specs=[
                pl.BlockSpec((1, tp, C), lambda b, i: (b, i, 0)),   # x tile
                pl.BlockSpec((C, C8), lambda b, i: (0, 0)),         # wq (bf16)
                pl.BlockSpec((1, C8), lambda b, i: (0, 0)),         # bq
                pl.BlockSpec((C, C8), lambda b, i: (0, 0)),         # wk (bf16)
                pl.BlockSpec((1, C8), lambda b, i: (0, 0)),         # bk
                pl.BlockSpec((C, C), lambda b, i: (0, 0)),          # wv (bf16)
                pl.BlockSpec((1, C), lambda b, i: (0, 0)),          # bv
            ],
            out_specs=[
                pl.BlockSpec((1, tp, C8), lambda b, i: (b, i, 0)),  # q
                pl.BlockSpec((1, tp, C8), lambda b, i: (b, i, 0)),  # k
                pl.BlockSpec((1, tp, C), lambda b, i: (b, i, 0)),   # v
            ],
        ),
        compiler_params=pltpu.CompilerParams(
            dimension_semantics=("parallel", "parallel"),
            vmem_limit_bytes=_VMEM_LIMIT_BYTES,
        ),
    )
    q_bnc, k_bnc, v_bnc = proj(x_bnc, wq, bq, wk, bk, wv, bv)

    # ---- stage 2: flash attention + residual ----
    flash = pl.pallas_call(
        functools.partial(_flash_attn_kernel,
                          n_valid=(N if n_pad != N else None),
                          block_k=block_k),
        out_shape=jax.ShapeDtypeStruct((B, n_pad, C), jnp.float32),
        grid_spec=pltpu.PrefetchScalarGridSpec(
            num_scalar_prefetch=0,
            grid=(B, n_pad // block_q, n_pad // block_k),
            in_specs=[
                pl.BlockSpec((1, block_q, C), lambda b, i, j: (b, i, 0)),   # x residual
                pl.BlockSpec((1, block_q, C8), lambda b, i, j: (b, i, 0)),  # q (bf16)
                pl.BlockSpec((1, block_k, C8), lambda b, i, j: (b, j, 0)),  # k (bf16)
                pl.BlockSpec((1, block_k, C), lambda b, i, j: (b, j, 0)),   # v (bf16)
                pl.BlockSpec(memory_space=pltpu.SMEM),                      # gamma scalar
            ],
            out_specs=pl.BlockSpec((1, block_q, C), lambda b, i, j: (b, i, 0)),
            scratch_shapes=[
                pltpu.VMEM((block_q, 1), jnp.float32),   # running max m
                pltpu.VMEM((block_q, 1), jnp.float32),   # running sum l
                pltpu.VMEM((block_q, C), jnp.float32),   # unnormalized output accumulator
            ],
        ),
        compiler_params=pltpu.CompilerParams(
            dimension_semantics=("parallel", "parallel", "arbitrary"),
            vmem_limit_bytes=_VMEM_LIMIT_BYTES,
        ),
    )
    out_pad = flash(x_bnc, q_bnc, k_bnc, v_bnc, gamma)

    out_bnc = out_pad[:, :N, :]
    return jnp.transpose(out_bnc, (0, 2, 1)).reshape(B, C, H, W)


def init_params(key, in_channels):
    """Deterministic synthetic init matching nn.Conv2d(in, out, 1) weight shapes.

    PyTorch conv weight is (C_out, C_in, 1, 1); we store the equivalent matmul
    weight already transposed as (C_in, C_out) so the kernels do x @ W + b.
    """
    c8 = in_channels // 8
    k = jax.random.split(key, 6)
    scale = 0.05
    return {
        "wq": scale * jax.random.normal(k[0], (in_channels, c8), jnp.float32),
        "bq": scale * jax.random.normal(k[1], (c8,), jnp.float32),
        "wk": scale * jax.random.normal(k[2], (in_channels, c8), jnp.float32),
        "bk": scale * jax.random.normal(k[3], (c8,), jnp.float32),
        "wv": scale * jax.random.normal(k[4], (in_channels, in_channels), jnp.float32),
        "bv": scale * jax.random.normal(k[5], (in_channels,), jnp.float32),
        # nn.Parameter(torch.zeros(1)) -> nonzero so the attention path is exercised
        "gamma": jnp.array([0.5], jnp.float32),
    }


def _reference(x_nchw, params):
    """Pure-JAX f32 reference mirroring the PyTorch forward exactly."""
    B, C, H, W = x_nchw.shape
    N = H * W
    x = x_nchw.reshape(B, C, N)                                                   # (B, C, N)
    q = jnp.einsum("bcn,ck->bkn", x, params["wq"]) + params["bq"][None, :, None]  # (B, C8, N)
    k = jnp.einsum("bcn,ck->bkn", x, params["wk"]) + params["bk"][None, :, None]
    v = jnp.einsum("bcn,ck->bkn", x, params["wv"]) + params["bv"][None, :, None]  # (B, C, N)
    energy = jnp.einsum("bkn,bkm->bnm", q, k)                                     # (B, N, N)
    attn = jax.nn.softmax(energy, axis=2)
    out = jnp.einsum("bcj,bij->bci", v, attn)                                     # (B, C, N)
    out = out.reshape(B, C, H, W)
    return params["gamma"][0] * out + x_nchw


if __name__ == "__main__":
    key = jax.random.PRNGKey(0)
    k1, k2, k3, k4 = jax.random.split(key, 4)

    # Test 1: N = 18*18 = 324 (not a multiple of 128) with 128-token tiles ->
    # exercises the pad+mask path and multi-step online-softmax accumulation.
    B, C, H, W = 2, 32, 18, 18
    x = jax.random.normal(k1, (B, C, H, W), jnp.float32)
    params = init_params(k2, C)
    out = jax.block_until_ready(
        self_attention_block(x, params, block_q=128, block_k=128))
    ref = _reference(x, params)
    assert out.shape == (B, C, H, W)
    # bf16 MXU operands + bf16 Q/K/V storage -> slightly loose tolerance vs pure f32.
    assert jnp.allclose(out, ref, atol=1e-2, rtol=1e-2), "test 1 mismatch vs reference"

    # Test 2: lane-dense channels (C=128) with default tiles and divisible N.
    B2, C2, H2, W2 = 2, 128, 16, 16
    x2 = jax.random.normal(k3, (B2, C2, H2, W2), jnp.float32)
    params2 = init_params(k4, C2)
    out2 = jax.block_until_ready(self_attention_block(x2, params2))
    ref2 = _reference(x2, params2)
    assert out2.shape == (B2, C2, H2, W2)
    assert jnp.allclose(out2, ref2, atol=1e-2, rtol=1e-2), "test 2 mismatch vs reference"

    print("KERNEL_OK")
</pallas_src>

<mosaic_0001>
module attributes {stable_mosaic.version = 11 : i64} {
  func.func @_qkv_proj_kernel(%arg0: i32, %arg1: i32, %arg2: memref<1x128x32xf32, #tpu.memory_space<vmem>>, %arg3: memref<32x4xbf16, #tpu.memory_space<vmem>>, %arg4: memref<1x4xf32, #tpu.memory_space<vmem>>, %arg5: memref<32x4xbf16, #tpu.memory_space<vmem>>, %arg6: memref<1x4xf32, #tpu.memory_space<vmem>>, %arg7: memref<32x32xbf16, #tpu.memory_space<vmem>>, %arg8: memref<1x32xf32, #tpu.memory_space<vmem>>, %arg9: memref<1x128x4xbf16, #tpu.memory_space<vmem>>, %arg10: memref<1x128x4xbf16, #tpu.memory_space<vmem>>, %arg11: memref<1x128x32xbf16, #tpu.memory_space<vmem>>) attributes {dimension_semantics = [#tpu.dimension_semantics<parallel>, #tpu.dimension_semantics<parallel>], iteration_bounds = array<i64: 2, 3>, scalar_prefetch = 0 : i64, scratch_operands = 0 : i64, tpu.core_type = #tpu.core_type<tc>, window_params = [{transform_indices = @transform_0, window_bounds = array<i64: 1, 128, 32>}, {pipeline_mode = #tpu.pipeline_mode<synchronous>, transform_indices = @transform_1, window_bounds = array<i64: 32, 4>}, {pipeline_mode = #tpu.pipeline_mode<synchronous>, transform_indices = @transform_2, window_bounds = array<i64: 1, 4>}, {pipeline_mode = #tpu.pipeline_mode<synchronous>, transform_indices = @transform_3, window_bounds = array<i64: 32, 4>}, {pipeline_mode = #tpu.pipeline_mode<synchronous>, transform_indices = @transform_4, window_bounds = array<i64: 1, 4>}, {pipeline_mode = #tpu.pipeline_mode<synchronous>, transform_indices = @transform_5, window_bounds = array<i64: 32, 32>}, {pipeline_mode = #tpu.pipeline_mode<synchronous>, transform_indices = @transform_6, window_bounds = array<i64: 1, 32>}, {transform_indices = @transform_7, window_bounds = array<i64: 1, 128, 4>}, {transform_indices = @transform_8, window_bounds = array<i64: 1, 128, 4>}, {transform_indices = @transform_9, window_bounds = array<i64: 1, 128, 32>}]} {
    %c0 = arith.constant 0 : index
    %c0_0 = arith.constant 0 : index
    %c0_1 = arith.constant 0 : index
    %0 = vector.load %arg2[%c0, %c0_0, %c0_1] : memref<1x128x32xf32, #tpu.memory_space<vmem>>, vector<1x128x32xf32>
    %1 = vector.shape_cast %0 : vector<1x128x32xf32> to vector<128x32xf32>
    %2 = arith.truncf %1 : vector<128x32xf32> to vector<128x32xbf16>
    %c0_2 = arith.constant 0 : index
    %c0_3 = arith.constant 0 : index
    %3 = vector.load %arg3[%c0_2, %c0_3] : memref<32x4xbf16, #tpu.memory_space<vmem>>, vector<32x4xbf16>
    %cst = arith.constant dense<0.000000e+00> : vector<128x4xf32>
    %4 = tpu.matmul %2, %3, %cst {dimension_numbers = #tpu.dot_dimension_numbers<[1], [0], [0], [1], [0, 0, 1, 1], [], []>} : vector<128x32xbf16>, vector<32x4xbf16>, vector<128x4xf32> -> vector<128x4xf32>
    %c0_4 = arith.constant 0 : index
    %c0_5 = arith.constant 0 : index
    %5 = vector.load %arg4[%c0_4, %c0_5] : memref<1x4xf32, #tpu.memory_space<vmem>>, vector<1x4xf32>
    %6 = vector.broadcast %5 : vector<1x4xf32> to vector<128x4xf32>
    %7 = arith.addf %4, %6 : vector<128x4xf32>
    %c0_6 = arith.constant 0 : index
    %c0_7 = arith.constant 0 : index
    %8 = vector.load %arg5[%c0_6, %c0_7] : memref<32x4xbf16, #tpu.memory_space<vmem>>, vector<32x4xbf16>
    %cst_8 = arith.constant dense<0.000000e+00> : vector<128x4xf32>
    %9 = tpu.matmul %2, %8, %cst_8 {dimension_numbers = #tpu.dot_dimension_numbers<[1], [0], [0], [1], [0, 0, 1, 1], [], []>} : vector<128x32xbf16>, vector<32x4xbf16>, vector<128x4xf32> -> vector<128x4xf32>
    %c0_9 = arith.constant 0 : index
    %c0_10 = arith.constant 0 : index
    %10 = vector.load %arg6[%c0_9, %c0_10] : memref<1x4xf32, #tpu.memory_space<vmem>>, vector<1x4xf32>
    %11 = vector.broadcast %10 : vector<1x4xf32> to vector<128x4xf32>
    %12 = arith.addf %9, %11 : vector<128x4xf32>
    %c0_11 = arith.constant 0 : index
    %c0_12 = arith.constant 0 : index
    %13 = vector.load %arg7[%c0_11, %c0_12] : memref<32x32xbf16, #tpu.memory_space<vmem>>, vector<32x32xbf16>
    %cst_13 = arith.constant dense<0.000000e+00> : vector<128x32xf32>
    %14 = tpu.matmul %2, %13, %cst_13 {dimension_numbers = #tpu.dot_dimension_numbers<[1], [0], [0], [1], [0, 0, 1, 1], [], []>} : vector<128x32xbf16>, vector<32x32xbf16>, vector<128x32xf32> -> vector<128x32xf32>
    %c0_14 = arith.constant 0 : index
    %c0_15 = arith.constant 0 : index
    %15 = vector.load %arg8[%c0_14, %c0_15] : memref<1x32xf32, #tpu.memory_space<vmem>>, vector<1x32xf32>
    %16 = vector.broadcast %15 : vector<1x32xf32> to vector<128x32xf32>
    %17 = arith.addf %14, %16 : vector<128x32xf32>
    %18 = arith.truncf %7 : vector<128x4xf32> to vector<128x4xbf16>
    %c0_16 = arith.constant 0 : index
    %c0_17 = arith.constant 0 : index
    %c0_18 = arith.constant 0 : index
    %19 = vector.load %arg9[%c0_16, %c0_17, %c0_18] : memref<1x128x4xbf16, #tpu.memory_space<vmem>>, vector<1x128x4xbf16>
    %20 = vector.shape_cast %19 : vector<1x128x4xbf16> to vector<128x4xbf16>
    %21 = vector.shape_cast %18 : vector<128x4xbf16> to vector<1x128x4xbf16>
    tpu.vector_store %arg9[%c0_16, %c0_17, %c0_18], %21 {strides = array<i32>} : memref<1x128x4xbf16, #tpu.memory_space<vmem>>, vector<1x128x4xbf16>,
    %22 = arith.truncf %12 : vector<128x4xf32> to vector<128x4xbf16>
    %c0_19 = arith.constant 0 : index
    %c0_20 = arith.constant 0 : index
    %c0_21 = arith.constant 0 : index
    %23 = vector.load %arg10[%c0_19, %c0_20, %c0_21] : memref<1x128x4xbf16, #tpu.memory_space<vmem>>, vector<1x128x4xbf16>
    %24 = vector.shape_cast %23 : vector<1x128x4xbf16> to vector<128x4xbf16>
    %25 = vector.shape_cast %22 : vector<128x4xbf16> to vector<1x128x4xbf16>
    tpu.vector_store %arg10[%c0_19, %c0_20, %c0_21], %25 {strides = array<i32>} : memref<1x128x4xbf16, #tpu.memory_space<vmem>>, vector<1x128x4xbf16>,
    %26 = arith.truncf %17 : vector<128x32xf32> to vector<128x32xbf16>
    %c0_22 = arith.constant 0 : index
    %c0_23 = arith.constant 0 : index
    %c0_24 = arith.constant 0 : index
    %27 = vector.load %arg11[%c0_22, %c0_23, %c0_24] : memref<1x128x32xbf16, #tpu.memory_space<vmem>>, vector<1x128x32xbf16>
    %28 = vector.shape_cast %27 : vector<1x128x32xbf16> to vector<128x32xbf16>
    %29 = vector.shape_cast %26 : vector<128x32xbf16> to vector<1x128x32xbf16>
    tpu.vector_store %arg11[%c0_22, %c0_23, %c0_24], %29 {strides = array<i32>} : memref<1x128x32xbf16, #tpu.memory_space<vmem>>, vector<1x128x32xbf16>,
    return
  }
  func.func @transform_0(%arg0: i32, %arg1: i32) -> (i32, i32, i32) {
    %c0_i32 = arith.constant 0 : i32
    %c0_i32_0 = arith.constant 0 : i32
    return %arg0, %arg1, %c0_i32 : i32, i32, i32
  }
  func.func @transform_1(%arg0: i32, %arg1: i32) -> (i32, i32) {
    %c0_i32 = arith.constant 0 : i32
    %c0_i32_0 = arith.constant 0 : i32
    %c0_i32_1 = arith.constant 0 : i32
    return %c0_i32, %c0_i32_0 : i32, i32
  }
  func.func @transform_2(%arg0: i32, %arg1: i32) -> (i32, i32) {
    %c0_i32 = arith.constant 0 : i32
    %c0_i32_0 = arith.constant 0 : i32
    %c0_i32_1 = arith.constant 0 : i32
    return %c0_i32, %c0_i32_0 : i32, i32
  }
  func.func @transform_3(%arg0: i32, %arg1: i32) -> (i32, i32) {
    %c0_i32 = arith.constant 0 : i32
    %c0_i32_0 = arith.constant 0 : i32
    %c0_i32_1 = arith.constant 0 : i32
    return %c0_i32, %c0_i32_0 : i32, i32
  }
  func.func @transform_4(%arg0: i32, %arg1: i32) -> (i32, i32) {
    %c0_i32 = arith.constant 0 : i32
    %c0_i32_0 = arith.constant 0 : i32
    %c0_i32_1 = arith.constant 0 : i32
    return %c0_i32, %c0_i32_0 : i32, i32
  }
  func.func @transform_5(%arg0: i32, %arg1: i32) -> (i32, i32) {
    %c0_i32 = arith.constant 0 : i32
    %c0_i32_0 = arith.constant 0 : i32
    %c0_i32_1 = arith.constant 0 : i32
    return %c0_i32, %c0_i32_0 : i32, i32
  }
  func.func @transform_6(%arg0: i32, %arg1: i32) -> (i32, i32) {
    %c0_i32 = arith.constant 0 : i32
    %c0_i32_0 = arith.constant 0 : i32
    %c0_i32_1 = arith.constant 0 : i32
    return %c0_i32, %c0_i32_0 : i32, i32
  }
  func.func @transform_7(%arg0: i32, %arg1: i32) -> (i32, i32, i32) {
    %c0_i32 = arith.constant 0 : i32
    %c0_i32_0 = arith.constant 0 : i32
    return %arg0, %arg1, %c0_i32 : i32, i32, i32
  }
  func.func @transform_8(%arg0: i32, %arg1: i32) -> (i32, i32, i32) {
    %c0_i32 = arith.constant 0 : i32
    %c0_i32_0 = arith.constant 0 : i32
    return %arg0, %arg1, %c0_i32 : i32, i32, i32
  }
  func.func @transform_9(%arg0: i32, %arg1: i32) -> (i32, i32, i32) {
    %c0_i32 = arith.constant 0 : i32
    %c0_i32_0 = arith.constant 0 : i32
    return %arg0, %arg1, %c0_i32 : i32, i32, i32
  }
}

</mosaic_0001>

<llo_original>
// kernel: tpu_custom_call.1
$region0: #{tpu_custom_call.1}
  #allocation0 [shape = 'u32[]', space=smem, size = 0x4, offset = 0x4, fixed_abs, tag = 'smem constant byte address 0x4 - core index']
  #allocation1 [shape = 'u32[144,128]{1,0:T(1,128)}', space=vmem, size = 0x12000, scoped, tag = 'internal scratch']
  %s0 = inlined_call_operand.vmem [shape: f32[2,384,32], index: 0, kind: input, shape index: {}]
  %s1 = inlined_call_operand.vmem [shape: bf16[32,4], index: 1, kind: input, shape index: {}]
  %s2 = inlined_call_operand.vmem [shape: f32[1,4], index: 2, kind: input, shape index: {}]
  %s3 = inlined_call_operand.vmem [shape: bf16[32,4], index: 3, kind: input, shape index: {}]
  %s4 = inlined_call_operand.vmem [shape: f32[1,4], index: 4, kind: input, shape index: {}]
  %s5 = inlined_call_operand.vmem [shape: bf16[32,32], index: 5, kind: input, shape index: {}]
  %s6 = inlined_call_operand.vmem [shape: f32[1,32], index: 6, kind: input, shape index: {}]
  %s7 = inlined_call_operand.vmem [shape: bf16[2,384,4], index: 7, kind: output, shape index: {0}]
  %s8 = inlined_call_operand.vmem [shape: bf16[2,384,4], index: 8, kind: output, shape index: {1}]
  %s9 = inlined_call_operand.vmem [shape: bf16[2,384,32], index: 9, kind: output, shape index: {2}]
  %10 = xla_tuple %s7, %s8, %s9
  %s11 = sld [smem:[#allocation0]]
  $region77: #{tpu_custom_call.1} parent=0
    _
  %s13 = ssub.s32 1, %s11
  %s14 = scalar_select 0, %s13, %s11
  loop: start=0, step=1, limit=8
  $region2: #{tpu_custom_call.1} parent=0 // loop_pre_header
    _
  $region3: #{tpu_custom_call.1} parent=0 // loop_header
    %s16 = sphi 0, %s20
    %p17 = scmp.ge.s32.totalorder %s16, 8
    %s23 = sphi 0, %s35
    %s24 = sphi 0, %s31
    %s25 = sphi 0, %s23
    %s26 = sphi 0, %s24
    %s27 = sphi 0, %s25
    %s28 = sphi 0, %s26
    %s40 = sphi 0, %s42
    %s43 = sphi 0, %s40
    %s44 = sphi 0, %s43
    %s60 = sphi 0, %s44
    %s64 = sphi 0, %s64
    %s66 = sphi 0, %s64
    %s67 = sphi 0, %s66
    %s81 = sphi 0, %s67
    %s85 = sphi 0, %s85
    %s87 = sphi 0, %s85
    %s88 = sphi 0, %s87
    %s102 = sphi 0, %s88
    %s106 = sphi 0, %s106
    %s108 = sphi 0, %s106
    %s109 = sphi 0, %s108
    %s123 = sphi 0, %s109
    %s127 = sphi 0, %s127
    %s129 = sphi 0, %s127
    %s130 = sphi 0, %s129
    %s144 = sphi 0, %s130
    %s148 = sphi 0, %s148
    %s150 = sphi 0, %s148
    %s151 = sphi 0, %s150
    %s165 = sphi 0, %s151
    %s169 = sphi 0, %s169
    %s171 = sphi 0, %s169
    %s172 = sphi 0, %s171
    %s186 = sphi 0, %s172
    %s194 = sphi 0, %s196
    %s197 = sphi 0, %s194
    %s198 = sphi 0, %s197
    %s214 = sphi 0, %s198
    %s222 = sphi 0, %s224
    %s225 = sphi 0, %s222
    %s226 = sphi 0, %s225
    %s242 = sphi 0, %s226
    %s250 = sphi 0, %s252
    %s253 = sphi 0, %s250
    %s254 = sphi 0, %s253
    %s270 = sphi 0, %s254
  $region4: #{tpu_custom_call.1} parent=0 // loop_header_branch
    %19 = sbr.rel (%p17) target = $region8
  $region5: #{tpu_custom_call.1} parent=0 // loop_body
    %s21 = ssub.s32 %s16, 1
    %s22 = ssub.s32 %s16, 2
    %s29 = sadd.s32 1, %s24
    %p30 = scmp.ge.s32.totalorder %s29, 3
    %s31 = scalar_select %p30, 0, %s29
    %s32 = sadd.s32 1, %s23
    %s33 = scalar_select %p30, %s32, %s23
    %p34 = scmp.ge.s32.totalorder %s33, 2
    %s35 = scalar_select %p34, 0, %s33
    %s36 = ssub.s32 %s23, %s35
    %s37 = ssub.s32 %s24, %s31
    %s38 = sor.u32 %s36, %s37
    %p39 = scmp.eq.s32.totalorder %s38, 0
    %s41 = sadd.s32 %s40, 1
    %s42 = scalar_select %p39, %s40, %s41
    %p45 = pneg %p39
    %p46 = scmp.eq.s32.totalorder %s16, 5
    %p47 = por %p45, %p46
    %p48 = scmp.ne.s32.totalorder %s40, %s43
    %p49 = scmp.eq.s32.totalorder %s16, 0
    %p50 = por %p48, %p49
    %p51 = scmp.ne.s32.totalorder %s40, %s43
    %p52 = scmp.eq.s32.totalorder %s21, 5
    %p53 = por %p51, %p52
    %p54 = scmp.ne.s32.totalorder %s43, %s44
    %p55 = scmp.eq.s32.totalorder %s21, 0
    %p56 = por %p54, %p55
    %p57 = scmp.ne.s32.totalorder %s43, %s44
    %p58 = scmp.eq.s32.totalorder %s22, 5
    %p59 = por %p57, %p58
    %p61 = scmp.ne.s32.totalorder %s44, %s60
    %p62 = scmp.eq.s32.totalorder %s22, 0
    %p63 = por %p61, %p62
    %s65 = sadd.s32 %s64, 1
    %p68 = scmp.eq.s32.totalorder %s16, 5
    %p69 = scmp.ne.s32.totalorder %s64, %s66
    %p70 = scmp.eq.s32.totalorder %s16, 0
    %p71 = por %p69, %p70
    %p72 = scmp.ne.s32.totalorder %s64, %s66
    %p73 = scmp.eq.s32.totalorder %s21, 5
    %p74 = por %p72, %p73
    %p75 = scmp.ne.s32.totalorder %s66, %s67
    %p76 = scmp.eq.s32.totalorder %s21, 0
    %p77 = por %p75, %p76
    %p78 = scmp.ne.s32.totalorder %s66, %s67
    %p79 = scmp.eq.s32.totalorder %s22, 5
    %p80 = por %p78, %p79
    %p82 = scmp.ne.s32.totalorder %s67, %s81
    %p83 = scmp.eq.s32.totalorder %s22, 0
    %p84 = por %p82, %p83
    %s86 = sadd.s32 %s85, 1
    %p89 = scmp.eq.s32.totalorder %s16, 5
    %p90 = scmp.ne.s32.totalorder %s85, %s87
    %p91 = scmp.eq.s32.totalorder %s16, 0
    %p92 = por %p90, %p91
    %p93 = scmp.ne.s32.totalorder %s85, %s87
    %p94 = scmp.eq.s32.totalorder %s21, 5
    %p95 = por %p93, %p94
    %p96 = scmp.ne.s32.totalorder %s87, %s88
    %p97 = scmp.eq.s32.totalorder %s21, 0
    %p98 = por %p96, %p97
    %p99 = scmp.ne.s32.totalorder %s87, %s88
    %p100 = scmp.eq.s32.totalorder %s22, 5
    %p101 = por %p99, %p100
    %p103 = scmp.ne.s32.totalorder %s88, %s102
    %p104 = scmp.eq.s32.totalorder %s22, 0
    %p105 = por %p103, %p104
    %s107 = sadd.s32 %s106, 1
    %p110 = scmp.eq.s32.totalorder %s16, 5
    %p111 = scmp.ne.s32.totalorder %s106, %s108
    %p112 = scmp.eq.s32.totalorder %s16, 0
    %p113 = por %p111, %p112
    %p114 = scmp.ne.s32.totalorder %s106, %s108
    %p115 = scmp.eq.s32.totalorder %s21, 5
    %p116 = por %p114, %p115
    %p117 = scmp.ne.s32.totalorder %s108, %s109
    %p118 = scmp.eq.s32.totalorder %s21, 0
    %p119 = por %p117, %p118
    %p120 = scmp.ne.s32.totalorder %s108, %s109
    %p121 = scmp.eq.s32.totalorder %s22, 5
    %p122 = por %p120, %p121
    %p124 = scmp.ne.s32.totalorder %s109, %s123
    %p125 = scmp.eq.s32.totalorder %s22, 0
    %p126 = por %p124, %p125
    %s128 = sadd.s32 %s127, 1
    %p131 = scmp.eq.s32.totalorder %s16, 5
    %p132 = scmp.ne.s32.totalorder %s127, %s129
    %p133 = scmp.eq.s32.totalorder %s16, 0
    %p134 = por %p132, %p133
    %p135 = scmp.ne.s32.totalorder %s127, %s129
    %p136 = scmp.eq.s32.totalorder %s21, 5
    %p137 = por %p135, %p136
    %p138 = scmp.ne.s32.totalorder %s129, %s130
    %p139 = scmp.eq.s32.totalorder %s21, 0
    %p140 = por %p138, %p139
    %p141 = scmp.ne.s32.totalorder %s129, %s130
    %p142 = scmp.eq.s32.totalorder %s22, 5
    %p143 = por %p141, %p142
    %p145 = scmp.ne.s32.totalorder %s130, %s144
    %p146 = scmp.eq.s32.totalorder %s22, 0
    %p147 = por %p145, %p146
    %s149 = sadd.s32 %s148, 1
    %p152 = scmp.eq.s32.totalorder %s16, 5
    %p153 = scmp.ne.s32.totalorder %s148, %s150
    %p154 = scmp.eq.s32.totalorder %s16, 0
    %p155 = por %p153, %p154
    %p156 = scmp.ne.s32.totalorder %s148, %s150
    %p157 = scmp.eq.s32.totalorder %s21, 5
    %p158 = por %p156, %p157
    %p159 = scmp.ne.s32.totalorder %s150, %s151
    %p160 = scmp.eq.s32.totalorder %s21, 0
    %p161 = por %p159, %p160
    %p162 = scmp.ne.s32.totalorder %s150, %s151
    %p163 = scmp.eq.s32.totalorder %s22, 5
    %p164 = por %p162, %p163
    %p166 = scmp.ne.s32.totalorder %s151, %s165
    %p167 = scmp.eq.s32.totalorder %s22, 0
    %p168 = por %p166, %p167
    %s170 = sadd.s32 %s169, 1
    %p173 = scmp.eq.s32.totalorder %s16, 5
    %p174 = scmp.ne.s32.totalorder %s169, %s171
    %p175 = scmp.eq.s32.totalorder %s16, 0
    %p176 = por %p174, %p175
    %p177 = scmp.ne.s32.totalorder %s169, %s171
    %p178 = scmp.eq.s32.totalorder %s21, 5
    %p179 = por %p177, %p178
    %p180 = scmp.ne.s32.totalorder %s171, %s172
    %p181 = scmp.eq.s32.totalorder %s21, 0
    %p182 = por %p180, %p181
    %p183 = scmp.ne.s32.totalorder %s171, %s172
    %p184 = scmp.eq.s32.totalorder %s22, 5
    %p185 = por %p183, %p184
    %p187 = scmp.ne.s32.totalorder %s172, %s186
    %p188 = scmp.eq.s32.totalorder %s22, 0
    %p189 = por %p187, %p188
    %s190 = ssub.s32 %s23, %s35
    %s191 = ssub.s32 %s24, %s31
    %s192 = sor.u32 %s190, %s191
    %p193 = scmp.eq.s32.totalorder %s192, 0
    %s195 = sadd.s32 %s194, 1
    %s196 = scalar_select %p193, %s194, %s195
    %p199 = pneg %p193
    %p200 = scmp.eq.s32.totalorder %s16, 5
    %p201 = por %p199, %p200
    %p202 = scmp.ne.s32.totalorder %s194, %s197
    %p203 = scmp.eq.s32.totalorder %s16, 0
    %p204 = por %p202, %p203
    %p205 = scmp.ne.s32.totalorder %s194, %s197
    %p206 = scmp.eq.s32.totalorder %s21, 5
    %p207 = por %p205, %p206
    %p208 = scmp.ne.s32.totalorder %s197, %s198
    %p209 = scmp.eq.s32.totalorder %s21, 0
    %p210 = por %p208, %p209
    %p211 = scmp.ne.s32.totalorder %s197, %s198
    %p212 = scmp.eq.s32.totalorder %s22, 5
    %p213 = por %p211, %p212
    %p215 = scmp.ne.s32.totalorder %s198, %s214
    %p216 = scmp.eq.s32.totalorder %s22, 0
    %p217 = por %p215, %p216
    %s218 = ssub.s32 %s23, %s35
    %s219 = ssub.s32 %s24, %s31
    %s220 = sor.u32 %s218, %s219
    %p221 = scmp.eq.s32.totalorder %s220, 0
    %s223 = sadd.s32 %s222, 1
    %s224 = scalar_select %p221, %s222, %s223
    %p227 = pneg %p221
    %p228 = scmp.eq.s32.totalorder %s16, 5
    %p229 = por %p227, %p228
    %p230 = scmp.ne.s32.totalorder %s222, %s225
    %p231 = scmp.eq.s32.totalorder %s16, 0
    %p232 = por %p230, %p231
    %p233 = scmp.ne.s32.totalorder %s222, %s225
    %p234 = scmp.eq.s32.totalorder %s21, 5
    %p235 = por %p233, %p234
    %p236 = scmp.ne.s32.totalorder %s225, %s226
    %p237 = scmp.eq.s32.totalorder %s21, 0
    %p238 = por %p236, %p237
    %p239 = scmp.ne.s32.totalorder %s225, %s226
    %p240 = scmp.eq.s32.totalorder %s22, 5
    %p241 = por %p239, %p240
    %p243 = scmp.ne.s32.totalorder %s226, %s242
    %p244 = scmp.eq.s32.totalorder %s22, 0
    %p245 = por %p243, %p244
    %s246 = ssub.s32 %s23, %s35
    %s247 = ssub.s32 %s24, %s31
    %s248 = sor.u32 %s246, %s247
    %p249 = scmp.eq.s32.totalorder %s248, 0
    %s251 = sadd.s32 %s250, 1
    %s252 = scalar_select %p249, %s250, %s251
    %p255 = pneg %p249
    %p256 = scmp.eq.s32.totalorder %s16, 5
    %p257 = por %p255, %p256
    %p258 = scmp.ne.s32.totalorder %s250, %s253
    %p259 = scmp.eq.s32.totalorder %s16, 0
    %p260 = por %p258, %p259
    %p261 = scmp.ne.s32.totalorder %s250, %s253
    %p262 = scmp.eq.s32.totalorder %s21, 5
    %p263 = por %p261, %p262
    %p264 = scmp.ne.s32.totalorder %s253, %s254
    %p265 = scmp.eq.s32.totalorder %s21, 0
    %p266 = por %p264, %p265
    %p267 = scmp.ne.s32.totalorder %s253, %s254
    %p268 = scmp.eq.s32.totalorder %s22, 5
    %p269 = por %p267, %p268
    %p271 = scmp.ne.s32.totalorder %s254, %s270
    %p272 = scmp.eq.s32.totalorder %s22, 0
    %p273 = por %p271, %p272
    %p274 = scmp.le.s32.totalorder 1, %s16
    %p275 = scmp.lt.s32.totalorder %s16, 7
    %p276 = pnand %p274, %p275
    %p277 = pneg %p276
    // Predicated region
    $region9: #{tpu_custom_call.1} parent=5 // pred_check
      _
    $region10: #{tpu_custom_call.1} parent=5 // pred_check_branch
      %279 = sbr.rel (%p276) target = $region12
    $region11: #{tpu_custom_call.1} parent=5 // pred_region
      %s280 = ssub.s32 %s16, 1
      // Predicated region
      $region13: #{tpu_custom_call.1} parent=11 // pred_check
        %p281 = pneg %p77
      $region14: #{tpu_custom_call.1} parent=11 // pred_check_branch
        %283 = sbr.rel (%p281) target = $region16
      $region15: #{tpu_custom_call.1} parent=11 // pred_region
        _
      $region16: #{tpu_custom_call.1} parent=11 // pred_fallthru
        _
      // Predicated region
      $region17: #{tpu_custom_call.1} parent=11 // pred_check
        %p284 = pneg %p98
      $region18: #{tpu_custom_call.1} parent=11 // pred_check_branch
        %286 = sbr.rel (%p284) target = $region20
      $region19: #{tpu_custom_call.1} parent=11 // pred_region
        _
      $region20: #{tpu_custom_call.1} parent=11 // pred_fallthru
        _
      // Predicated region
      $region21: #{tpu_custom_call.1} parent=11 // pred_check
        %p287 = pneg %p119
      $region22: #{tpu_custom_call.1} parent=11 // pred_check_branch
        %289 = sbr.rel (%p287) target = $region24
      $region23: #{tpu_custom_call.1} parent=11 // pred_region
        _
      $region24: #{tpu_custom_call.1} parent=11 // pred_fallthru
        _
      // Predicated region
      $region25: #{tpu_custom_call.1} parent=11 // pred_check
        %p290 = pneg %p140
      $region26: #{tpu_custom_call.1} parent=11 // pred_check_branch
        %292 = sbr.rel (%p290) target = $region28
      $region27: #{tpu_custom_call.1} parent=11 // pred_region
        _
      $region28: #{tpu_custom_call.1} parent=11 // pred_fallthru
        _
      // Predicated region
      $region29: #{tpu_custom_call.1} parent=11 // pred_check
        %p293 = pneg %p161
      $region30: #{tpu_custom_call.1} parent=11 // pred_check_branch
        %295 = sbr.rel (%p293) target = $region32
      $region31: #{tpu_custom_call.1} parent=11 // pred_region
        _
      $region32: #{tpu_custom_call.1} parent=11 // pred_fallthru
        _
      // Predicated region
      $region33: #{tpu_custom_call.1} parent=11 // pred_check
        %p296 = pneg %p182
      $region34: #{tpu_custom_call.1} parent=11 // pred_check_branch
        %298 = sbr.rel (%p296) target = $region36
      $region35: #{tpu_custom_call.1} parent=11 // pred_region
        _
      $region36: #{tpu_custom_call.1} parent=11 // pred_fallthru
        _
    $region12: #{tpu_custom_call.1} parent=5 // pred_fallthru
      _
    %p299 = scmp.lt.s32.totalorder %s16, 6
    // Predicated region
    $region37: #{tpu_custom_call.1} parent=5 // pred_check
      %p300 = pneg %p299
    $region38: #{tpu_custom_call.1} parent=5 // pred_check_branch
      %302 = sbr.rel (%p300) target = $region40
    $region39: #{tpu_custom_call.1} parent=5 // pred_region
      // Predicated region
      $region41: #{tpu_custom_call.1} parent=39 // pred_check
        %p303 = pneg %p50
      $region42: #{tpu_custom_call.1} parent=39 // pred_check_branch
        %305 = sbr.rel (%p303) target = $region44
      $region43: #{tpu_custom_call.1} parent=39 // pred_region
        %s306 = smul.u32 16, %s24
        %p307 = scmp.lt.s32.totalorder %s23, 1
        %s308 = scalar_select %p307, %s23, 1
        %p309 = scmp.lt.s32.totalorder %s306, 47
        %s310 = scalar_select %p309, %s306, 47
        %s311 = smul.addr %s308, 48
        %s312 = sadd.s32 %s310, %s311
        %s313 = smul.addr %s312, 8
        %s314 = scalar_lea.vmem %s0, %s313
        %s315 = smul.u32 16, %s24
      $region44: #{tpu_custom_call.1} parent=39 // pred_fallthru
        _
    $region40: #{tpu_custom_call.1} parent=5 // pred_fallthru
      _
    %p316 = scmp.le.s32.totalorder 1, %s16
    %p317 = scmp.lt.s32.totalorder %s16, 7
    %p318 = pnand %p316, %p317
    %p319 = pneg %p318
    // Predicated region
    $region45: #{tpu_custom_call.1} parent=5 // pred_check
      _
    $region46: #{tpu_custom_call.1} parent=5 // pred_check_branch
      %321 = sbr.rel (%p318) target = $region48
    $region47: #{tpu_custom_call.1} parent=5 // pred_region
      %s322 = ssub.s32 %s16, 1
      %s323 = smul.u32 16, %s26
      %p324 = scmp.lt.s32.totalorder %s25, 1
      %s325 = scalar_select %p324, %s25, 1
      %p326 = scmp.lt.s32.totalorder %s323, 47
      %s327 = scalar_select %p326, %s323, 47
      %s328 = smul.addr %s325, 48
      %s329 = sadd.s32 %s327, %s328
      %s330 = smul.addr %s329, 8
      %s331 = scalar_lea.vmem %s0, %s330
      %p332 = pneg %p56
      %p333 = pneg %p53
      %p334 = pneg %p77
      %p335 = pneg %p74
      %p336 = pneg %p98
      %p337 = pneg %p95
      %p338 = pneg %p119
      %p339 = pneg %p116
      %p340 = pneg %p140
      %p341 = pneg %p137
      %p342 = pneg %p161
      %p343 = pneg %p158
      %p344 = pneg %p182
      %p345 = pneg %p179
      %p346 = pneg %p210
      %p347 = pneg %p207
      %s348 = smul.u32 16, %s26
      %p349 = scmp.lt.s32.totalorder %s25, 1
      %s350 = scalar_select %p349, %s25, 1
      %p351 = scmp.lt.s32.totalorder %s348, 47
      %s352 = scalar_select %p351, %s348, 47
      %s353 = smul.addr %s350, 48
      %s354 = sadd.s32 %s352, %s353
      %s355 = smul.addr %s354, 4
      %s356 = scalar_lea.vmem %s7, %s355
      %p357 = pneg %p238
      %p358 = pneg %p235
      %s359 = smul.u32 16, %s26
      %p360 = scmp.lt.s32.totalorder %s25, 1
      %s361 = scalar_select %p360, %s25, 1
      %p362 = scmp.lt.s32.totalorder %s359, 47
      %s363 = scalar_select %p362, %s359, 47
      %s364 = smul.addr %s361, 48
      %s365 = sadd.s32 %s363, %s364
      %s366 = smul.addr %s365, 4
      %s367 = scalar_lea.vmem %s8, %s366
      %p368 = pneg %p266
      %p369 = pneg %p263
      %s370 = smul.u32 16, %s26
      %p371 = scmp.lt.s32.totalorder %s25, 1
      %s372 = scalar_select %p371, %s25, 1
      %p373 = scmp.lt.s32.totalorder %s370, 47
      %s374 = scalar_select %p373, %s370, 47
      %s375 = smul.addr %s372, 48
      %s376 = sadd.s32 %s374, %s375
      %s377 = smul.addr %s376, 4
      %s378 = scalar_lea.vmem %s9, %s377
      %s379 = smul.u32 16, %s26
      %p380 = scmp.lt.s32.totalorder %s25, 1
      %s381 = scalar_select %p380, %s25, 1
      %p382 = scmp.lt.s32.totalorder %s379, 47
      %s383 = scalar_select %p382, %s379, 47
      %s384 = smul.addr %s381, 48
      %s385 = sadd.s32 %s383, %s384
      %s386 = smul.addr %s385, 8
      %s387 = scalar_lea.vmem %s0, %s386
      %s388 = smul.u32 16, %s26
      %s389 = smul.u32 16, %s26
      %p390 = scmp.lt.s32.totalorder %s25, 1
      %s391 = scalar_select %p390, %s25, 1
      %p392 = scmp.lt.s32.totalorder %s389, 47
      %s393 = scalar_select %p392, %s389, 47
      %s394 = smul.addr %s391, 48
      %s395 = sadd.s32 %s393, %s394
      %s396 = smul.addr %s395, 4
      %s397 = scalar_lea.vmem %s7, %s396
      %s398 = smul.u32 16, %s26
      %s399 = smul.u32 16, %s26
      %p400 = scmp.lt.s32.totalorder %s25, 1
      %s401 = scalar_select %p400, %s25, 1
      %p402 = scmp.lt.s32.totalorder %s399, 47
      %s403 = scalar_select %p402, %s399, 47
      %s404 = smul.addr %s401, 48
      %s405 = sadd.s32 %s403, %s404
      %s406 = smul.addr %s405, 4
      %s407 = scalar_lea.vmem %s8, %s406
      %s408 = smul.u32 16, %s26
      %s409 = smul.u32 16, %s26
      %p410 = scmp.lt.s32.totalorder %s25, 1
      %s411 = scalar_select %p410, %s25, 1
      %p412 = scmp.lt.s32.totalorder %s409, 47
      %s413 = scalar_select %p412, %s409, 47
      %s414 = smul.addr %s411, 48
      %s415 = sadd.s32 %s413, %s414
      %s416 = smul.addr %s415, 4
      %s417 = scalar_lea.vmem %s9, %s416
      %s418 = smul.u32 16, %s26
      %v420 = vld [vmem:[%s387] sm:$0xff]
      %v421 = vld [vmem:[%s387 + $0x8] sm:$0xff]
      %v422 = vld [vmem:[%s387 + $0x10] sm:$0xff]
      %v423 = vld [vmem:[%s387 + $0x18] sm:$0xff]
      %v424 = vld [vmem:[%s387 + $0x20] sm:$0xff]
      %v425 = vld [vmem:[%s387 + $0x28] sm:$0xff]
      %v426 = vld [vmem:[%s387 + $0x30] sm:$0xff]
      %v427 = vld [vmem:[%s387 + $0x38] sm:$0xff]
      %v428 = vld [vmem:[%s387 + $0x40] sm:$0xff]
      %v429 = vld [vmem:[%s387 + $0x48] sm:$0xff]
      %v430 = vld [vmem:[%s387 + $0x50] sm:$0xff]
      %v431 = vld [vmem:[%s387 + $0x58] sm:$0xff]
      %v432 = vld [vmem:[%s387 + $0x60] sm:$0xff]
      %v433 = vld [vmem:[%s387 + $0x68] sm:$0xff]
      %v434 = vld [vmem:[%s387 + $0x70] sm:$0xff]
      %v435 = vld [vmem:[%s387 + $0x78] sm:$0xff]
      %v436 = vpack.c.bf16 %v421, %v420
      %v437 = vpack.c.bf16 %v423, %v422
      %v438 = vpack.c.bf16 %v425, %v424
      %v439 = vpack.c.bf16 %v427, %v426
      %v440 = vpack.c.bf16 %v429, %v428
      %v441 = vpack.c.bf16 %v431, %v430
      %v442 = vpack.c.bf16 %v433, %v432
      %v443 = vpack.c.bf16 %v435, %v434
      %v444 = vld [vmem:[%s1] sm:$0xf]
      %v445 = vld [vmem:[%s1 + $0x4] sm:$0xf]
      %v446 = vld [vmem:[%s1 + $0x8] sm:$0xf]
      %v447 = vld [vmem:[%s1 + $0xc] sm:$0xf]
      %v448 = vld [vmem:[%s2] sm:$0x1]
      %v450 = vlaneseq
      %v451 = vshrl.u32 %v450, 7
      %v452 = vsub.s32 0, %v451
      %v453 = vrot.slane %v448, %v452
      %v459 = vunpack.c.l.b16 %v444
      %v460 = vunpack.c.l.b16 %v445
      %v461 = vunpack.c.l.b16 %v446
      %v462 = vunpack.c.l.b16 %v447
      %v463 = vpack.c.b16 %v460, %v459
      %v464 = vpack.c.b16 %v462, %v461
      %vm467 = vcmask 261120
      %v469 = vsel %vm467, %v436, 0
      %v472 = vsel %vm467, %v437, 0
      %v475 = vsel %vm467, %v438, 0
      %v478 = vsel %vm467, %v439, 0
      %v481 = vsel %vm467, %v440, 0
      %v484 = vsel %vm467, %v441, 0
      %v487 = vsel %vm467, %v442, 0
      %v490 = vsel %vm467, %v443, 0
      %492 = vmatprep.subr.bf16.mxu0 0
      %493 = vmatpush1.bf16.msra.mxu0 %v463
      %494 = vmatprep.subr.bf16.mxu0 0
      %495 = vmatpush1.bf16.msra.mxu0 %v464
      %496 = vmatprep.subr.bf16.mxu0 0
      %497 = vmatpush1.bf16.msra.mxu0 0
      %498 = vmatprep.subr.bf16.mxu0 0
      %499 = vmatpush1.bf16.msra.mxu0 0
      %500 = vmatprep.subr.bf16.mxu0 0
      %501 = vmatpush1.bf16.msra.mxu0 0
      %502 = vmatprep.subr.bf16.mxu0 0
      %503 = vmatpush1.bf16.msra.mxu0 0
      %504 = vmatprep.subr.bf16.mxu0 0
      %505 = vmatpush1.bf16.msra.mxu0 0
      %506 = vmatprep.subr.bf16.mxu0 0
      %507 = vmatpush1.bf16.msra.mxu0 0
      %508 = vmatprep.subr.bf16.mxu0 0
      %509 = vmatpush1.bf16.msra.mxu0 0
      %510 = vmatprep.subr.bf16.mxu0 0
      %511 = vmatpush1.bf16.msra.mxu0 0
      %512 = vmatprep.subr.bf16.mxu0 0
      %513 = vmatpush1.bf16.msra.mxu0 0
      %514 = vmatprep.subr.bf16.mxu0 0
      %515 = vmatpush1.bf16.msra.mxu0 0
      %516 = vmatprep.subr.bf16.mxu0 0
      %517 = vmatpush1.bf16.msra.mxu0 0
      %518 = vmatprep.subr.bf16.mxu0 0
      %519 = vmatpush1.bf16.msra.mxu0 0
      %520 = vmatprep.subr.bf16.mxu0 0
      %521 = vmatpush1.bf16.msra.mxu0 0
      %522 = vmatprep.subr.bf16.mxu0 0
      %523 = vmatpush1.bf16.msra.mxu0 0
      %524 = vmatprep.mubr.bf16.mxu0 0
      %525 = vmatmul.mubr.bf16.gmra.mrb[0].mxu0 %v469
      %v526 = vpop.f32.mrb[0].mxu0
      %v527 = vadd.f32 %v453, %v526
      %v528 = vpop.f32.mrb[0].mxu0
      %v529 = vpop.f32.mrb[0].mxu0
      %v530 = vadd.f32 %v453, %v529
      %v531 = vpop.f32.mrb[0].mxu0
      %532 = vmatprep.mubr.bf16.mxu0 0
      %533 = vmatmul.mubr.bf16.gmra.mrb[0].mxu0 %v472
      %v534 = vpop.f32.mrb[0].mxu0
      %v535 = vadd.f32 %v453, %v534
      %v536 = vpop.f32.mrb[0].mxu0
      %v537 = vpop.f32.mrb[0].mxu0
      %v538 = vadd.f32 %v453, %v537
      %v539 = vpop.f32.mrb[0].mxu0
      %540 = vmatprep.mubr.bf16.mxu0 0
      %541 = vmatmul.mubr.bf16.gmra.mrb[0].mxu0 %v475
      %v542 = vpop.f32.mrb[0].mxu0
      %v543 = vadd.f32 %v453, %v542
      %v544 = vpop.f32.mrb[0].mxu0
      %v545 = vpop.f32.mrb[0].mxu0
      %v546 = vadd.f32 %v453, %v545
      %v547 = vpop.f32.mrb[0].mxu0
      %548 = vmatprep.mubr.bf16.mxu0 0
      %549 = vmatmul.mubr.bf16.gmra.mrb[0].mxu0 %v478
      %v550 = vpop.f32.mrb[0].mxu0
      %v551 = vadd.f32 %v453, %v550
      %v552 = vpop.f32.mrb[0].mxu0
      %v553 = vpop.f32.mrb[0].mxu0
      %v554 = vadd.f32 %v453, %v553
      %v555 = vpop.f32.mrb[0].mxu0
      %556 = vmatprep.mubr.bf16.mxu0 0
      %557 = vmatmul.mubr.bf16.gmra.mrb[0].mxu0 %v481
      %v558 = vpop.f32.mrb[0].mxu0
      %v559 = vadd.f32 %v453, %v558
      %v560 = vpop.f32.mrb[0].mxu0
      %v561 = vpop.f32.mrb[0].mxu0
      %v562 = vadd.f32 %v453, %v561
      %v563 = vpop.f32.mrb[0].mxu0
      %564 = vmatprep.mubr.bf16.mxu0 0
      %565 = vmatmul.mubr.bf16.gmra.mrb[0].mxu0 %v484
      %v566 = vpop.f32.mrb[0].mxu0
      %v567 = vadd.f32 %v453, %v566
      %v568 = vpop.f32.mrb[0].mxu0
      %v569 = vpop.f32.mrb[0].mxu0
      %v570 = vadd.f32 %v453, %v569
      %v571 = vpop.f32.mrb[0].mxu0
      %572 = vmatprep.mubr.bf16.mxu0 0
      %573 = vmatmul.mubr.bf16.gmra.mrb[0].mxu0 %v487
      %v574 = vpop.f32.mrb[0].mxu0
      %v575 = vadd.f32 %v453, %v574
      %v576 = vpop.f32.mrb[0].mxu0
      %v577 = vpop.f32.mrb[0].mxu0
      %v578 = vadd.f32 %v453, %v577
      %v579 = vpop.f32.mrb[0].mxu0
      %580 = vmatprep.mubr.bf16.mxu0 0
      %581 = vmatmul.mubr.bf16.gmra.mrb[0].mxu0 %v490
      %v582 = vpop.f32.mrb[0].mxu0
      %v583 = vadd.f32 %v453, %v582
      %v584 = vpop.f32.mrb[0].mxu0
      %v585 = vpop.f32.mrb[0].mxu0
      %v586 = vadd.f32 %v453, %v585
      %v587 = vpop.f32.mrb[0].mxu0
      %588 = vdwg.mxu0
      %v589 = vld [vmem:[%s3] sm:$0xf]
      %v590 = vld [vmem:[%s3 + $0x4] sm:$0xf]
      %v591 = vld [vmem:[%s3 + $0x8] sm:$0xf]
      %v592 = vld [vmem:[%s3 + $0xc] sm:$0xf]
      %v593 = vld [vmem:[%s4] sm:$0x1]
      %v595 = vlaneseq
      %v596 = vshrl.u32 %v595, 7
      %v597 = vsub.s32 0, %v596
      %v598 = vrot.slane %v593, %v597
      %v604 = vunpack.c.l.b16 %v589
      %v605 = vunpack.c.l.b16 %v590
      %v606 = vunpack.c.l.b16 %v591
      %v607 = vunpack.c.l.b16 %v592
      %v608 = vpack.c.b16 %v605, %v604
      %v609 = vpack.c.b16 %v607, %v606
      %612 = vmatprep.subr.bf16.mxu0 0
      %613 = vmatpush1.bf16.msra.mxu0 %v608
      %614 = vmatprep.subr.bf16.mxu0 0
      %615 = vmatpush1.bf16.msra.mxu0 %v609
      %616 = vmatprep.subr.bf16.mxu0 0
      %617 = vmatpush1.bf16.msra.mxu0 0
      %618 = vmatprep.subr.bf16.mxu0 0
      %619 = vmatpush1.bf16.msra.mxu0 0
      %620 = vmatprep.subr.bf16.mxu0 0
      %621 = vmatpush1.bf16.msra.mxu0 0
      %622 = vmatprep.subr.bf16.mxu0 0
      %623 = vmatpush1.bf16.msra.mxu0 0
      %624 = vmatprep.subr.bf16.mxu0 0
      %625 = vmatpush1.bf16.msra.mxu0 0
      %626 = vmatprep.subr.bf16.mxu0 0
      %627 = vmatpush1.bf16.msra.mxu0 0
      %628 = vmatprep.subr.bf16.mxu0 0
      %629 = vmatpush1.bf16.msra.mxu0 0
      %630 = vmatprep.subr.bf16.mxu0 0
      %631 = vmatpush1.bf16.msra.mxu0 0
      %632 = vmatprep.subr.bf16.mxu0 0
      %633 = vmatpush1.bf16.msra.mxu0 0
      %634 = vmatprep.subr.bf16.mxu0 0
      %635 = vmatpush1.bf16.msra.mxu0 0
      %636 = vmatprep.subr.bf16.mxu0 0
      %637 = vmatpush1.bf16.msra.mxu0 0
      %638 = vmatprep.subr.bf16.mxu0 0
      %639 = vmatpush1.bf16.msra.mxu0 0
      %640 = vmatprep.subr.bf16.mxu0 0
      %641 = vmatpush1.bf16.msra.mxu0 0
      %642 = vmatprep.subr.bf16.mxu0 0
      %643 = vmatpush1.bf16.msra.mxu0 0
      %644 = vmatprep.mubr.bf16.mxu0 0
      %645 = vmatmul.mubr.bf16.gmra.mrb[0].mxu0 %v469
      %v646 = vpop.f32.mrb[0].mxu0
      %v647 = vadd.f32 %v598, %v646
      %v648 = vpop.f32.mrb[0].mxu0
      %v649 = vpop.f32.mrb[0].mxu0
      %v650 = vadd.f32 %v598, %v649
      %v651 = vpop.f32.mrb[0].mxu0
      %652 = vmatprep.mubr.bf16.mxu0 0
      %653 = vmatmul.mubr.bf16.gmra.mrb[0].mxu0 %v472
      %v654 = vpop.f32.mrb[0].mxu0
      %v655 = vadd.f32 %v598, %v654
      %v656 = vpop.f32.mrb[0].mxu0
      %v657 = vpop.f32.mrb[0].mxu0
      %v658 = vadd.f32 %v598, %v657
      %v659 = vpop.f32.mrb[0].mxu0
      %660 = vmatprep.mubr.bf16.mxu0 0
      %661 = vmatmul.mubr.bf16.gmra.mrb[0].mxu0 %v475
      %v662 = vpop.f32.mrb[0].mxu0
      %v663 = vadd.f32 %v598, %v662
      %v664 = vpop.f32.mrb[0].mxu0
      %v665 = vpop.f32.mrb[0].mxu0
      %v666 = vadd.f32 %v598, %v665
      %v667 = vpop.f32.mrb[0].mxu0
      %668 = vmatprep.mubr.bf16.mxu0 0
      %669 = vmatmul.mubr.bf16.gmra.mrb[0].mxu0 %v478
      %v670 = vpop.f32.mrb[0].mxu0
      %v671 = vadd.f32 %v598, %v670
      %v672 = vpop.f32.mrb[0].mxu0
      %v673 = vpop.f32.mrb[0].mxu0
      %v674 = vadd.f32 %v598, %v673
      %v675 = vpop.f32.mrb[0].mxu0
      %676 = vmatprep.mubr.bf16.mxu0 0
      %677 = vmatmul.mubr.bf16.gmra.mrb[0].mxu0 %v481
      %v678 = vpop.f32.mrb[0].mxu0
      %v679 = vadd.f32 %v598, %v678
      %v680 = vpop.f32.mrb[0].mxu0
      %v681 = vpop.f32.mrb[0].mxu0
      %v682 = vadd.f32 %v598, %v681
      %v683 = vpop.f32.mrb[0].mxu0
      %684 = vmatprep.mubr.bf16.mxu0 0
      %685 = vmatmul.mubr.bf16.gmra.mrb[0].mxu0 %v484
      %v686 = vpop.f32.mrb[0].mxu0
      %v687 = vadd.f32 %v598, %v686
      %v688 = vpop.f32.mrb[0].mxu0
      %v689 = vpop.f32.mrb[0].mxu0
      %v690 = vadd.f32 %v598, %v689
      %v691 = vpop.f32.mrb[0].mxu0
      %692 = vmatprep.mubr.bf16.mxu0 0
      %693 = vmatmul.mubr.bf16.gmra.mrb[0].mxu0 %v487
      %v694 = vpop.f32.mrb[0].mxu0
      %v695 = vadd.f32 %v598, %v694
      %v696 = vpop.f32.mrb[0].mxu0
      %v697 = vpop.f32.mrb[0].mxu0
      %v698 = vadd.f32 %v598, %v697
      %v699 = vpop.f32.mrb[0].mxu0
      %700 = vmatprep.mubr.bf16.mxu0 0
      %701 = vmatmul.mubr.bf16.gmra.mrb[0].mxu0 %v490
      %v702 = vpop.f32.mrb[0].mxu0
      %v703 = vadd.f32 %v598, %v702
      %v704 = vpop.f32.mrb[0].mxu0
      %v705 = vpop.f32.mrb[0].mxu0
      %v706 = vadd.f32 %v598, %v705
      %v707 = vpop.f32.mrb[0].mxu0
      %708 = vdwg.mxu0
      %v709 = vld [vmem:[%s5] sm:$0xf]
      %v710 = vld [vmem:[%s5 + $0x4] sm:$0xf]
      %v711 = vld [vmem:[%s5 + $0x8] sm:$0xf]
      %v712 = vld [vmem:[%s5 + $0xc] sm:$0xf]
      %v713 = vld [vmem:[%s6] sm:$0x1]
      %v715 = vlaneseq
      %v716 = vshrl.u32 %v715, 7
      %v717 = vsub.s32 0, %v716
      %v718 = vrot.slane %v713, %v717
      %v724 = vunpack.c.l.b16 %v709
      %v725 = vunpack.c.l.b16 %v710
      %v726 = vunpack.c.l.b16 %v711
      %v727 = vunpack.c.l.b16 %v712
      %v728 = vpack.c.b16 %v725, %v724
      %v729 = vpack.c.b16 %v727, %v726
      %732 = vmatprep.subr.bf16.mxu0 0
      %733 = vmatpush1.bf16.msra.mxu0 %v728
      %734 = vmatprep.subr.bf16.mxu0 0
      %735 = vmatpush1.bf16.msra.mxu0 %v729
      %736 = vmatprep.subr.bf16.mxu0 0
      %737 = vmatpush1.bf16.msra.mxu0 0
      %738 = vmatprep.subr.bf16.mxu0 0
      %739 = vmatpush1.bf16.msra.mxu0 0
      %740 = vmatprep.subr.bf16.mxu0 0
      %741 = vmatpush1.bf16.msra.mxu0 0
      %742 = vmatprep.subr.bf16.mxu0 0
      %743 = vmatpush1.bf16.msra.mxu0 0
      %744 = vmatprep.subr.bf16.mxu0 0
      %745 = vmatpush1.bf16.msra.mxu0 0
      %746 = vmatprep.subr.bf16.mxu0 0
      %747 = vmatpush1.bf16.msra.mxu0 0
      %748 = vmatprep.subr.bf16.mxu0 0
      %749 = vmatpush1.bf16.msra.mxu0 0
      %750 = vmatprep.subr.bf16.mxu0 0
      %751 = vmatpush1.bf16.msra.mxu0 0
      %752 = vmatprep.subr.bf16.mxu0 0
      %753 = vmatpush1.bf16.msra.mxu0 0
      %754 = vmatprep.subr.bf16.mxu0 0
      %755 = vmatpush1.bf16.msra.mxu0 0
      %756 = vmatprep.subr.bf16.mxu0 0
      %757 = vmatpush1.bf16.msra.mxu0 0
      %758 = vmatprep.subr.bf16.mxu0 0
      %759 = vmatpush1.bf16.msra.mxu0 0
      %760 = vmatprep.subr.bf16.mxu0 0
      %761 = vmatpush1.bf16.msra.mxu0 0
      %762 = vmatprep.subr.bf16.mxu0 0
      %763 = vmatpush1.bf16.msra.mxu0 0
      %764 = vmatprep.mubr.bf16.mxu0 0
      %765 = vmatmul.mubr.bf16.gmra.mrb[0].mxu0 %v469
      %v766 = vpop.f32.mrb[0].mxu0
      %v767 = vadd.f32 %v718, %v766
      %v768 = vpop.f32.mrb[0].mxu0
      %v769 = vpop.f32.mrb[0].mxu0
      %v770 = vadd.f32 %v718, %v769
      %v771 = vpop.f32.mrb[0].mxu0
      %772 = vmatprep.mubr.bf16.mxu0 0
      %773 = vmatmul.mubr.bf16.gmra.mrb[0].mxu0 %v472
      %v774 = vpop.f32.mrb[0].mxu0
      %v775 = vadd.f32 %v718, %v774
      %v776 = vpop.f32.mrb[0].mxu0
      %v777 = vpop.f32.mrb[0].mxu0
      %v778 = vadd.f32 %v718, %v777
      %v779 = vpop.f32.mrb[0].mxu0
      %780 = vmatprep.mubr.bf16.mxu0 0
      %781 = vmatmul.mubr.bf16.gmra.mrb[0].mxu0 %v475
      %v782 = vpop.f32.mrb[0].mxu0
      %v783 = vadd.f32 %v718, %v782
      %v784 = vpop.f32.mrb[0].mxu0
      %v785 = vpop.f32.mrb[0].mxu0
      %v786 = vadd.f32 %v718, %v785
      %v787 = vpop.f32.mrb[0].mxu0
      %788 = vmatprep.mubr.bf16.mxu0 0
      %789 = vmatmul.mubr.bf16.gmra.mrb[0].mxu0 %v478
      %v790 = vpop.f32.mrb[0].mxu0
      %v791 = vadd.f32 %v718, %v790
      %v792 = vpop.f32.mrb[0].mxu0
      %v793 = vpop.f32.mrb[0].mxu0
      %v794 = vadd.f32 %v718, %v793
      %v795 = vpop.f32.mrb[0].mxu0
      %796 = vmatprep.mubr.bf16.mxu0 0
      %797 = vmatmul.mubr.bf16.gmra.mrb[0].mxu0 %v481
      %v798 = vpop.f32.mrb[0].mxu0
      %v799 = vadd.f32 %v718, %v798
      %v800 = vpop.f32.mrb[0].mxu0
      %v801 = vpop.f32.mrb[0].mxu0
      %v802 = vadd.f32 %v718, %v801
      %v803 = vpop.f32.mrb[0].mxu0
      %804 = vmatprep.mubr.bf16.mxu0 0
      %805 = vmatmul.mubr.bf16.gmra.mrb[0].mxu0 %v484
      %v806 = vpop.f32.mrb[0].mxu0
      %v807 = vadd.f32 %v718, %v806
      %v808 = vpop.f32.mrb[0].mxu0
      %v809 = vpop.f32.mrb[0].mxu0
      %v810 = vadd.f32 %v718, %v809
      %v811 = vpop.f32.mrb[0].mxu0
      %812 = vmatprep.mubr.bf16.mxu0 0
      %813 = vmatmul.mubr.bf16.gmra.mrb[0].mxu0 %v487
      %v814 = vpop.f32.mrb[0].mxu0
      %v815 = vadd.f32 %v718, %v814
      %v816 = vpop.f32.mrb[0].mxu0
      %v817 = vpop.f32.mrb[0].mxu0
      %v818 = vadd.f32 %v718, %v817
      %v819 = vpop.f32.mrb[0].mxu0
      %820 = vmatprep.mubr.bf16.mxu0 0
      %821 = vmatmul.mubr.bf16.gmra.mrb[0].mxu0 %v490
      %v822 = vpop.f32.mrb[0].mxu0
      %v823 = vadd.f32 %v718, %v822
      %v824 = vpop.f32.mrb[0].mxu0
      %v825 = vpop.f32.mrb[0].mxu0
      %v826 = vadd.f32 %v718, %v825
      %v827 = vpop.f32.mrb[0].mxu0
      %828 = vdwg.mxu0
      %v829 = vpack.c.bf16 %v530, %v527
      %v830 = vpack.c.bf16 %v538, %v535
      %v831 = vpack.c.bf16 %v546, %v543
      %v832 = vpack.c.bf16 %v554, %v551
      %v833 = vpack.c.bf16 %v562, %v559
      %v834 = vpack.c.bf16 %v570, %v567
      %v835 = vpack.c.bf16 %v578, %v575
      %v836 = vpack.c.bf16 %v586, %v583
      %v845 = vunpack.c.l.b16 %v829
      %v846 = vunpack.c.h.b16 %v829
      %v847 = vunpack.c.l.b16 %v830
      %v848 = vunpack.c.h.b16 %v830
      %v849 = vunpack.c.l.b16 %v831
      %v850 = vunpack.c.h.b16 %v831
      %v851 = vunpack.c.l.b16 %v832
      %v852 = vunpack.c.h.b16 %v832
      %v853 = vunpack.c.l.b16 %v833
      %v854 = vunpack.c.h.b16 %v833
      %v855 = vunpack.c.l.b16 %v834
      %v856 = vunpack.c.h.b16 %v834
      %v857 = vunpack.c.l.b16 %v835
      %v858 = vunpack.c.h.b16 %v835
      %v859 = vunpack.c.l.b16 %v836
      %v860 = vunpack.c.h.b16 %v836
      %v861 = vpack.c.b16 %v845, %v845
      %v862 = vpack.c.b16 %v846, %v846
      %v863 = vpack.c.b16 %v847, %v847
      %v864 = vpack.c.b16 %v848, %v848
      %v865 = vpack.c.b16 %v849, %v849
      %v866 = vpack.c.b16 %v850, %v850
      %v867 = vpack.c.b16 %v851, %v851
      %v868 = vpack.c.b16 %v852, %v852
      %v869 = vpack.c.b16 %v853, %v853
      %v870 = vpack.c.b16 %v854, %v854
      %v871 = vpack.c.b16 %v855, %v855
      %v872 = vpack.c.b16 %v856, %v856
      %v873 = vpack.c.b16 %v857, %v857
      %v874 = vpack.c.b16 %v858, %v858
      %v875 = vpack.c.b16 %v859, %v859
      %v876 = vpack.c.b16 %v860, %v860
      %vm893 = vcmask 27648
      %894 = vst.msk [vmem:[%s397] sm:$0xf] %vm893, %v861
      %895 = vst.msk [vmem:[%s397 + $0x4] sm:$0xf] %vm893, %v862
      %896 = vst.msk [vmem:[%s397 + $0x8] sm:$0xf] %vm893, %v863
      %897 = vst.msk [vmem:[%s397 + $0xc] sm:$0xf] %vm893, %v864
      %898 = vst.msk [vmem:[%s397 + $0x10] sm:$0xf] %vm893, %v865
      %899 = vst.msk [vmem:[%s397 + $0x14] sm:$0xf] %vm893, %v866
      %900 = vst.msk [vmem:[%s397 + $0x18] sm:$0xf] %vm893, %v867
      %901 = vst.msk [vmem:[%s397 + $0x1c] sm:$0xf] %vm893, %v868
      %902 = vst.msk [vmem:[%s397 + $0x20] sm:$0xf] %vm893, %v869
      %903 = vst.msk [vmem:[%s397 + $0x24] sm:$0xf] %vm893, %v870
      %904 = vst.msk [vmem:[%s397 + $0x28] sm:$0xf] %vm893, %v871
      %905 = vst.msk [vmem:[%s397 + $0x2c] sm:$0xf] %vm893, %v872
      %906 = vst.msk [vmem:[%s397 + $0x30] sm:$0xf] %vm893, %v873
      %907 = vst.msk [vmem:[%s397 + $0x34] sm:$0xf] %vm893, %v874
      %908 = vst.msk [vmem:[%s397 + $0x38] sm:$0xf] %vm893, %v875
      %909 = vst.msk [vmem:[%s397 + $0x3c] sm:$0xf] %vm893, %v876
      %v910 = vpack.c.bf16 %v650, %v647
      %v911 = vpack.c.bf16 %v658, %v655
      %v912 = vpack.c.bf16 %v666, %v663
      %v913 = vpack.c.bf16 %v674, %v671
      %v914 = vpack.c.bf16 %v682, %v679
      %v915 = vpack.c.bf16 %v690, %v687
      %v916 = vpack.c.bf16 %v698, %v695
      %v917 = vpack.c.bf16 %v706, %v703
      %v926 = vunpack.c.l.b16 %v910
      %v927 = vunpack.c.h.b16 %v910
      %v928 = vunpack.c.l.b16 %v911
      %v929 = vunpack.c.h.b16 %v911
      %v930 = vunpack.c.l.b16 %v912
      %v931 = vunpack.c.h.b16 %v912
      %v932 = vunpack.c.l.b16 %v913
      %v933 = vunpack.c.h.b16 %v913
      %v934 = vunpack.c.l.b16 %v914
      %v935 = vunpack.c.h.b16 %v914
      %v936 = vunpack.c.l.b16 %v915
      %v937 = vunpack.c.h.b16 %v915
      %v938 = vunpack.c.l.b16 %v916
      %v939 = vunpack.c.h.b16 %v916
      %v940 = vunpack.c.l.b16 %v917
      %v941 = vunpack.c.h.b16 %v917
      %v942 = vpack.c.b16 %v926, %v926
      %v943 = vpack.c.b16 %v927, %v927
      %v944 = vpack.c.b16 %v928, %v928
      %v945 = vpack.c.b16 %v929, %v929
      %v946 = vpack.c.b16 %v930, %v930
      %v947 = vpack.c.b16 %v931, %v931
      %v948 = vpack.c.b16 %v932, %v932
      %v949 = vpack.c.b16 %v933, %v933
      %v950 = vpack.c.b16 %v934, %v934
      %v951 = vpack.c.b16 %v935, %v935
      %v952 = vpack.c.b16 %v936, %v936
      %v953 = vpack.c.b16 %v937, %v937
      %v954 = vpack.c.b16 %v938, %v938
      %v955 = vpack.c.b16 %v939, %v939
      %v956 = vpack.c.b16 %v940, %v940
      %v957 = vpack.c.b16 %v941, %v941
      %974 = vst.msk [vmem:[%s407] sm:$0xf] %vm893, %v942
      %975 = vst.msk [vmem:[%s407 + $0x4] sm:$0xf] %vm893, %v943
      %976 = vst.msk [vmem:[%s407 + $0x8] sm:$0xf] %vm893, %v944
      %977 = vst.msk [vmem:[%s407 + $0xc] sm:$0xf] %vm893, %v945
      %978 = vst.msk [vmem:[%s407 + $0x10] sm:$0xf] %vm893, %v946
      %979 = vst.msk [vmem:[%s407 + $0x14] sm:$0xf] %vm893, %v947
      %980 = vst.msk [vmem:[%s407 + $0x18] sm:$0xf] %vm893, %v948
      %981 = vst.msk [vmem:[%s407 + $0x1c] sm:$0xf] %vm893, %v949
      %982 = vst.msk [vmem:[%s407 + $0x20] sm:$0xf] %vm893, %v950
      %983 = vst.msk [vmem:[%s407 + $0x24] sm:$0xf] %vm893, %v951
      %984 = vst.msk [vmem:[%s407 + $0x28] sm:$0xf] %vm893, %v952
      %985 = vst.msk [vmem:[%s407 + $0x2c] sm:$0xf] %vm893, %v953
      %986 = vst.msk [vmem:[%s407 + $0x30] sm:$0xf] %vm893, %v954
      %987 = vst.msk [vmem:[%s407 + $0x34] sm:$0xf] %vm893, %v955
      %988 = vst.msk [vmem:[%s407 + $0x38] sm:$0xf] %vm893, %v956
      %989 = vst.msk [vmem:[%s407 + $0x3c] sm:$0xf] %vm893, %v957
      %v990 = vpack.c.bf16 %v770, %v767
      %v991 = vpack.c.bf16 %v778, %v775
      %v992 = vpack.c.bf16 %v786, %v783
      %v993 = vpack.c.bf16 %v794, %v791
      %v994 = vpack.c.bf16 %v802, %v799
      %v995 = vpack.c.bf16 %v810, %v807
      %v996 = vpack.c.bf16 %v818, %v815
      %v997 = vpack.c.bf16 %v826, %v823
      %v1006 = vunpack.c.l.b16 %v990
      %v1007 = vunpack.c.h.b16 %v990
      %v1008 = vunpack.c.l.b16 %v991
      %v1009 = vunpack.c.h.b16 %v991
      %v1010 = vunpack.c.l.b16 %v992
      %v1011 = vunpack.c.h.b16 %v992
      %v1012 = vunpack.c.l.b16 %v993
      %v1013 = vunpack.c.h.b16 %v993
      %v1014 = vunpack.c.l.b16 %v994
      %v1015 = vunpack.c.h.b16 %v994
      %v1016 = vunpack.c.l.b16 %v995
      %v1017 = vunpack.c.h.b16 %v995
      %v1018 = vunpack.c.l.b16 %v996
      %v1019 = vunpack.c.h.b16 %v996
      %v1020 = vunpack.c.l.b16 %v997
      %v1021 = vunpack.c.h.b16 %v997
      %v1022 = vpack.c.b16 %v1006, %v1006
      %v1023 = vpack.c.b16 %v1007, %v1007
      %v1024 = vpack.c.b16 %v1008, %v1008
      %v1025 = vpack.c.b16 %v1009, %v1009
      %v1026 = vpack.c.b16 %v1010, %v1010
      %v1027 = vpack.c.b16 %v1011, %v1011
      %v1028 = vpack.c.b16 %v1012, %v1012
      %v1029 = vpack.c.b16 %v1013, %v1013
      %v1030 = vpack.c.b16 %v1014, %v1014
      %v1031 = vpack.c.b16 %v1015, %v1015
      %v1032 = vpack.c.b16 %v1016, %v1016
      %v1033 = vpack.c.b16 %v1017, %v1017
      %v1034 = vpack.c.b16 %v1018, %v1018
      %v1035 = vpack.c.b16 %v1019, %v1019
      %v1036 = vpack.c.b16 %v1020, %v1020
      %v1037 = vpack.c.b16 %v1021, %v1021
      %vm1054 = vcmask 257024
      %1055 = vst.msk [vmem:[%s417] sm:$0xf] %vm1054, %v1022
      %1056 = vst.msk [vmem:[%s417 + $0x4] sm:$0xf] %vm1054, %v1023
      %1057 = vst.msk [vmem:[%s417 + $0x8] sm:$0xf] %vm1054, %v1024
      %1058 = vst.msk [vmem:[%s417 + $0xc] sm:$0xf] %vm1054, %v1025
      %1059 = vst.msk [vmem:[%s417 + $0x10] sm:$0xf] %vm1054, %v1026
      %1060 = vst.msk [vmem:[%s417 + $0x14] sm:$0xf] %vm1054, %v1027
      %1061 = vst.msk [vmem:[%s417 + $0x18] sm:$0xf] %vm1054, %v1028
      %1062 = vst.msk [vmem:[%s417 + $0x1c] sm:$0xf] %vm1054, %v1029
      %1063 = vst.msk [vmem:[%s417 + $0x20] sm:$0xf] %vm1054, %v1030
      %1064 = vst.msk [vmem:[%s417 + $0x24] sm:$0xf] %vm1054, %v1031
      %1065 = vst.msk [vmem:[%s417 + $0x28] sm:$0xf] %vm1054, %v1032
      %1066 = vst.msk [vmem:[%s417 + $0x2c] sm:$0xf] %vm1054, %v1033
      %1067 = vst.msk [vmem:[%s417 + $0x30] sm:$0xf] %vm1054, %v1034
      %1068 = vst.msk [vmem:[%s417 + $0x34] sm:$0xf] %vm1054, %v1035
      %1069 = vst.msk [vmem:[%s417 + $0x38] sm:$0xf] %vm1054, %v1036
      %1070 = vst.msk [vmem:[%s417 + $0x3c] sm:$0xf] %vm1054, %v1037
      %s1071 = smul.u32 16, %s26
      %p1072 = scmp.lt.s32.totalorder %s25, 1
      %s1073 = scalar_select %p1072, %s25, 1
      %p1074 = scmp.lt.s32.totalorder %s1071, 47
      %s1075 = scalar_select %p1074, %s1071, 47
      %s1076 = smul.addr %s1073, 48
      %s1077 = sadd.s32 %s1075, %s1076
      %s1078 = smul.addr %s1077, 4
      %s1079 = scalar_lea.vmem %s7, %s1078
      %s1080 = smul.u32 16, %s26
      %p1081 = scmp.lt.s32.totalorder %s25, 1
      %s1082 = scalar_select %p1081, %s25, 1
      %p1083 = scmp.lt.s32.totalorder %s1080, 47
      %s1084 = scalar_select %p1083, %s1080, 47
      %s1085 = smul.addr %s1082, 48
      %s1086 = sadd.s32 %s1084, %s1085
      %s1087 = smul.addr %s1086, 4
      %s1088 = scalar_lea.vmem %s8, %s1087
      %s1089 = smul.u32 16, %s26
      %p1090 = scmp.lt.s32.totalorder %s25, 1
      %s1091 = scalar_select %p1090, %s25, 1
      %p1092 = scmp.lt.s32.totalorder %s1089, 47
      %s1093 = scalar_select %p1092, %s1089, 47
      %s1094 = smul.addr %s1091, 48
      %s1095 = sadd.s32 %s1093, %s1094
      %s1096 = smul.addr %s1095, 4
      %s1097 = scalar_lea.vmem %s9, %s1096
      // Predicated region
      $region49: #{tpu_custom_call.1} parent=47 // pred_check
        %p1098 = pneg %p207
      $region50: #{tpu_custom_call.1} parent=47 // pred_check_branch
        %1100 = sbr.rel (%p1098) target = $region52
      $region51: #{tpu_custom_call.1} parent=47 // pred_region
        %s1101 = smul.u32 16, %s26
      $region52: #{tpu_custom_call.1} parent=47 // pred_fallthru
        _
      // Predicated region
      $region53: #{tpu_custom_call.1} parent=47 // pred_check
        %p1102 = pneg %p235
      $region54: #{tpu_custom_call.1} parent=47 // pred_check_branch
        %1104 = sbr.rel (%p1102) target = $region56
      $region55: #{tpu_custom_call.1} parent=47 // pred_region
        %s1105 = smul.u32 16, %s26
      $region56: #{tpu_custom_call.1} parent=47 // pred_fallthru
        _
      // Predicated region
      $region57: #{tpu_custom_call.1} parent=47 // pred_check
        %p1106 = pneg %p263
      $region58: #{tpu_custom_call.1} parent=47 // pred_check_branch
        %1108 = sbr.rel (%p1106) target = $region60
      $region59: #{tpu_custom_call.1} parent=47 // pred_region
        %s1109 = smul.u32 16, %s26
      $region60: #{tpu_custom_call.1} parent=47 // pred_fallthru
        _
    $region48: #{tpu_custom_call.1} parent=5 // pred_fallthru
      _
    %p1110 = scmp.le.s32.totalorder 2, %s16
    // Predicated region
    $region61: #{tpu_custom_call.1} parent=5 // pred_check
      %p1111 = pneg %p1110
    $region62: #{tpu_custom_call.1} parent=5 // pred_check_branch
      %1113 = sbr.rel (%p1111) target = $region64
    $region63: #{tpu_custom_call.1} parent=5 // pred_region
      %s1114 = ssub.s32 %s16, 2
      // Predicated region
      $region65: #{tpu_custom_call.1} parent=63 // pred_check
        %p1115 = pneg %p213
      $region66: #{tpu_custom_call.1} parent=63 // pred_check_branch
        %1117 = sbr.rel (%p1115) target = $region68
      $region67: #{tpu_custom_call.1} parent=63 // pred_region
        %s1118 = smul.u32 16, %s28
        %p1119 = scmp.lt.s32.totalorder %s27, 1
        %s1120 = scalar_select %p1119, %s27, 1
        %p1121 = scmp.lt.s32.totalorder %s1118, 47
        %s1122 = scalar_select %p1121, %s1118, 47
        %s1123 = smul.addr %s1120, 48
        %s1124 = sadd.s32 %s1122, %s1123
        %s1125 = smul.addr %s1124, 4
        %s1126 = scalar_lea.vmem %s7, %s1125
      $region68: #{tpu_custom_call.1} parent=63 // pred_fallthru
        _
      // Predicated region
      $region69: #{tpu_custom_call.1} parent=63 // pred_check
        %p1127 = pneg %p241
      $region70: #{tpu_custom_call.1} parent=63 // pred_check_branch
        %1129 = sbr.rel (%p1127) target = $region72
      $region71: #{tpu_custom_call.1} parent=63 // pred_region
        %s1130 = smul.u32 16, %s28
        %p1131 = scmp.lt.s32.totalorder %s27, 1
        %s1132 = scalar_select %p1131, %s27, 1
        %p1133 = scmp.lt.s32.totalorder %s1130, 47
        %s1134 = scalar_select %p1133, %s1130, 47
        %s1135 = smul.addr %s1132, 48
        %s1136 = sadd.s32 %s1134, %s1135
        %s1137 = smul.addr %s1136, 4
        %s1138 = scalar_lea.vmem %s8, %s1137
      $region72: #{tpu_custom_call.1} parent=63 // pred_fallthru
        _
      // Predicated region
      $region73: #{tpu_custom_call.1} parent=63 // pred_check
        %p1139 = pneg %p269
      $region74: #{tpu_custom_call.1} parent=63 // pred_check_branch
        %1141 = sbr.rel (%p1139) target = $region76
      $region75: #{tpu_custom_call.1} parent=63 // pred_region
        %s1142 = smul.u32 16, %s28
        %p1143 = scmp.lt.s32.totalorder %s27, 1
        %s1144 = scalar_select %p1143, %s27, 1
        %p1145 = scmp.lt.s32.totalorder %s1142, 47
        %s1146 = scalar_select %p1145, %s1142, 47
        %s1147 = smul.addr %s1144, 48
        %s1148 = sadd.s32 %s1146, %s1147
        %s1149 = smul.addr %s1148, 4
        %s1150 = scalar_lea.vmem %s9, %s1149
      $region76: #{tpu_custom_call.1} parent=63 // pred_fallthru
        _
    $region64: #{tpu_custom_call.1} parent=5 // pred_fallthru
      _
  $region6: #{tpu_custom_call.1} parent=0 // loop_footer
    %s20 = sadd.s32 1, %s16
  $region7: #{tpu_custom_call.1} parent=0 // loop_footer_branch
    %15 = sbr.rel target = $region3
  $region8: #{tpu_custom_call.1} parent=0 // loop_exit
    _

</llo_original>
